<compile_context>
chip_gen: v7x
topology: tpu7x:2x2x1
jax: 0.10.0
libtpu: 0.0.40
codegen_flags: <defaults>
</compile_context>

<pallas_src>
import jax
import jax.numpy as jnp
from jax.experimental import pallas as pl
from jax.experimental.pallas import tpu as pltpu

_LANES = 128
_SUBLANES = 8
# 512 rows x 128 lanes x 4 B = 256 KiB per feature slab per tile; with the
# stacked (2, rows, 128) input + (rows, 128) output and double buffering the
# pipeline stays ~1.5 MiB -- far under the scoped VMEM limit on all chips.
_MAX_TILE_ROWS = 512


def _ffnn_kernel(params_ref, x_ref, o_ref):
    """Fused VPU-only forward for the 2-2-1 sigmoid MLP.

    params_ref : SMEM f32[9] = [w1_00, w1_01, w1_10, w1_11, b1_0, b1_1,
                                w2_00, w2_01, b2_0]
    x_ref      : VMEM f32[2, tile_rows, 128]   feature-major, lane-dense
    o_ref      : VMEM f32[tile_rows, 128]      lane-dense output slab
    """
    x0 = x_ref[0]  # (tile_rows, 128) -- feature 0 for 128*tile_rows batch rows
    x1 = x_ref[1]  # (tile_rows, 128) -- feature 1

    w1_00 = params_ref[0]
    w1_01 = params_ref[1]
    w1_10 = params_ref[2]
    w1_11 = params_ref[3]
    b1_0 = params_ref[4]
    b1_1 = params_ref[5]
    w2_0 = params_ref[6]
    w2_1 = params_ref[7]
    b2_0 = params_ref[8]

    # Layer 1: Linear(2, 2) + sigmoid, as per-lane FMAs (no MXU, no transposes).
    h0 = jax.nn.sigmoid(x0 * w1_00 + x1 * w1_01 + b1_0)
    h1 = jax.nn.sigmoid(x0 * w1_10 + x1 * w1_11 + b1_1)

    # Layer 2: Linear(2, 1) + sigmoid. (If VALU-bound, sigmoid could be split
    # into exp + pl.reciprocal(approx=True) on the EUP; exact form kept here
    # for bit-faithful parity with the reference.)
    o_ref[...] = jax.nn.sigmoid(h0 * w2_0 + h1 * w2_1 + b2_0)


def feed_forward_nn(x, w1, b1, w2, b2, *, max_tile_rows=_MAX_TILE_ROWS):
    """sigmoid(sigmoid(x @ W1.T + b1) @ W2.T + b2), PyTorch-style (out,in) weights."""
    n = x.shape[0]

    # Lane-dense layout: 128 batch elements per vreg lane row.
    rows = -(-n // _LANES)                       # ceil(n / 128)
    rows = -(-rows // _SUBLANES) * _SUBLANES     # round up to sublane multiple
    tile_rows = min(max_tile_rows, rows)
    total_rows = -(-rows // tile_rows) * tile_rows
    n_pad = total_rows * _LANES

    # Feature-major, zero-padded: (2, total_rows, 128).
    x_fm = jnp.pad(x.astype(jnp.float32), ((0, n_pad - n), (0, 0)))
    x_fm = x_fm.T.reshape(2, total_rows, _LANES)

    # All scalars in one SMEM array (avoids five padded VMEM tiles / DMAs).
    params = jnp.concatenate(
        [w1.reshape(-1), b1.reshape(-1), w2.reshape(-1), b2.reshape(-1)]
    ).astype(jnp.float32)  # shape (9,)

    grid = (total_rows // tile_rows,)
    out = pl.pallas_call(
        _ffnn_kernel,
        out_shape=jax.ShapeDtypeStruct((total_rows, _LANES), jnp.float32),
        grid=grid,
        in_specs=[
            pl.BlockSpec(memory_space=pltpu.SMEM),                       # params
            pl.BlockSpec((2, tile_rows, _LANES), lambda i: (0, i, 0)),   # x slab
        ],
        out_specs=pl.BlockSpec((tile_rows, _LANES), lambda i: (i, 0)),
        compiler_params=pltpu.CompilerParams(
            dimension_semantics=("parallel",),   # shard rows across TCs (v7x)
        ),
    )(params, x_fm)

    # Restore the (N, 1) PyTorch output shape.
    return out.reshape(-1)[:n].reshape(n, 1)


def _ref_forward(x, w1, b1, w2, b2):
    h = jax.nn.sigmoid(x @ w1.T + b1)
    return jax.nn.sigmoid(h @ w2.T + b2)


if __name__ == "__main__":
    key = jax.random.PRNGKey(0)
    k1, k2, k3, k4, k5 = jax.random.split(key, 5)

    # nn.Linear-style init: U(-1/sqrt(fan_in), 1/sqrt(fan_in)), fan_in = 2.
    bound = 1.0 / jnp.sqrt(2.0)
    w1 = jax.random.uniform(k1, (2, 2), jnp.float32, -bound, bound)  # fc1.weight
    b1 = jax.random.uniform(k2, (2,), jnp.float32, -bound, bound)    # fc1.bias
    w2 = jax.random.uniform(k3, (1, 2), jnp.float32, -bound, bound)  # fc2.weight
    b2 = jax.random.uniform(k4, (1,), jnp.float32, -bound, bound)    # fc2.bias

    # 1) The literal XOR input from the PyTorch script (N=4).
    x = jnp.array([[0.0, 0.0], [0.0, 1.0], [1.0, 0.0], [1.0, 1.0]],
                  dtype=jnp.float32)
    out = jax.block_until_ready(feed_forward_nn(x, w1, b1, w2, b2))
    ref = _ref_forward(x, w1, b1, w2, b2)
    assert out.shape == (4, 1), out.shape
    assert jnp.allclose(out, ref, atol=1e-5, rtol=1e-5), (out, ref)

    # 2) A modest batch that exercises padding + a multi-tile parallel grid.
    xb = jax.random.uniform(k5, (3000, 2), jnp.float32)
    outb = jax.block_until_ready(
        feed_forward_nn(xb, w1, b1, w2, b2, max_tile_rows=8))  # grid = (3,)
    refb = _ref_forward(xb, w1, b1, w2, b2)
    assert outb.shape == (3000, 1), outb.shape
    assert jnp.allclose(outb, refb, atol=1e-5, rtol=1e-5)

    print("KERNEL_OK")
</pallas_src>

<mosaic_0001>
module attributes {stable_mosaic.version = 11 : i64} {
  func.func @_ffnn_kernel(%arg0: i32, %arg1: memref<9xf32, #tpu.memory_space<smem>>, %arg2: memref<2x8x128xf32, #tpu.memory_space<vmem>>, %arg3: memref<8x128xf32, #tpu.memory_space<vmem>>) attributes {dimension_semantics = [#tpu.dimension_semantics<parallel>], iteration_bounds = array<i64: 1>, scalar_prefetch = 0 : i64, scratch_operands = 0 : i64, tpu.core_type = #tpu.core_type<tc>, window_params = [{transform_indices = @transform_0, window_bounds = array<i64: 9>}, {transform_indices = @transform_1, window_bounds = array<i64: 2, 8, 128>}, {transform_indices = @transform_2, window_bounds = array<i64: 8, 128>}]} {
    %c0 = arith.constant 0 : index
    %c0_0 = arith.constant 0 : index
    %c0_1 = arith.constant 0 : index
    %0 = vector.load %arg2[%c0, %c0_0, %c0_1] : memref<2x8x128xf32, #tpu.memory_space<vmem>>, vector<1x8x128xf32>
    %1 = vector.shape_cast %0 : vector<1x8x128xf32> to vector<8x128xf32>
    %c1 = arith.constant 1 : index
    %c0_2 = arith.constant 0 : index
    %c0_3 = arith.constant 0 : index
    %2 = vector.load %arg2[%c1, %c0_2, %c0_3] : memref<2x8x128xf32, #tpu.memory_space<vmem>>, vector<1x8x128xf32>
    %3 = vector.shape_cast %2 : vector<1x8x128xf32> to vector<8x128xf32>
    %c0_4 = arith.constant 0 : index
    %4 = memref.load %arg1[%c0_4] : memref<9xf32, #tpu.memory_space<smem>>
    %c1_5 = arith.constant 1 : index
    %5 = memref.load %arg1[%c1_5] : memref<9xf32, #tpu.memory_space<smem>>
    %c2 = arith.constant 2 : index
    %6 = memref.load %arg1[%c2] : memref<9xf32, #tpu.memory_space<smem>>
    %c3 = arith.constant 3 : index
    %7 = memref.load %arg1[%c3] : memref<9xf32, #tpu.memory_space<smem>>
    %c4 = arith.constant 4 : index
    %8 = memref.load %arg1[%c4] : memref<9xf32, #tpu.memory_space<smem>>
    %c5 = arith.constant 5 : index
    %9 = memref.load %arg1[%c5] : memref<9xf32, #tpu.memory_space<smem>>
    %c6 = arith.constant 6 : index
    %10 = memref.load %arg1[%c6] : memref<9xf32, #tpu.memory_space<smem>>
    %c7 = arith.constant 7 : index
    %11 = memref.load %arg1[%c7] : memref<9xf32, #tpu.memory_space<smem>>
    %c8 = arith.constant 8 : index
    %12 = memref.load %arg1[%c8] : memref<9xf32, #tpu.memory_space<smem>>
    %13 = vector.broadcast %4 : f32 to vector<8x128xf32>
    %14 = arith.mulf %1, %13 : vector<8x128xf32>
    %15 = vector.broadcast %5 : f32 to vector<8x128xf32>
    %16 = arith.mulf %3, %15 : vector<8x128xf32>
    %17 = arith.addf %14, %16 : vector<8x128xf32>
    %18 = vector.broadcast %8 : f32 to vector<8x128xf32>
    %19 = arith.addf %17, %18 : vector<8x128xf32>
    %20 = arith.negf %19 : vector<8x128xf32>
    %21 = math.exp %20 : vector<8x128xf32>
    %cst = arith.constant 1.000000e+00 : f32
    %22 = vector.broadcast %cst : f32 to vector<8x128xf32>
    %23 = arith.addf %22, %21 : vector<8x128xf32>
    %24 = arith.divf %22, %23 : vector<8x128xf32>
    %25 = vector.broadcast %6 : f32 to vector<8x128xf32>
    %26 = arith.mulf %1, %25 : vector<8x128xf32>
    %27 = vector.broadcast %7 : f32 to vector<8x128xf32>
    %28 = arith.mulf %3, %27 : vector<8x128xf32>
    %29 = arith.addf %26, %28 : vector<8x128xf32>
    %30 = vector.broadcast %9 : f32 to vector<8x128xf32>
    %31 = arith.addf %29, %30 : vector<8x128xf32>
    %32 = arith.negf %31 : vector<8x128xf32>
    %33 = math.exp %32 : vector<8x128xf32>
    %cst_6 = arith.constant 1.000000e+00 : f32
    %34 = vector.broadcast %cst_6 : f32 to vector<8x128xf32>
    %35 = arith.addf %34, %33 : vector<8x128xf32>
    %36 = arith.divf %34, %35 : vector<8x128xf32>
    %37 = vector.broadcast %10 : f32 to vector<8x128xf32>
    %38 = arith.mulf %24, %37 : vector<8x128xf32>
    %39 = vector.broadcast %11 : f32 to vector<8x128xf32>
    %40 = arith.mulf %36, %39 : vector<8x128xf32>
    %41 = arith.addf %38, %40 : vector<8x128xf32>
    %42 = vector.broadcast %12 : f32 to vector<8x128xf32>
    %43 = arith.addf %41, %42 : vector<8x128xf32>
    %44 = arith.negf %43 : vector<8x128xf32>
    %45 = math.exp %44 : vector<8x128xf32>
    %cst_7 = arith.constant 1.000000e+00 : f32
    %46 = vector.broadcast %cst_7 : f32 to vector<8x128xf32>
    %47 = arith.addf %46, %45 : vector<8x128xf32>
    %48 = arith.divf %46, %47 : vector<8x128xf32>
    %c0_8 = arith.constant 0 : index
    %c0_9 = arith.constant 0 : index
    %49 = vector.load %arg3[%c0_8, %c0_9] : memref<8x128xf32, #tpu.memory_space<vmem>>, vector<8x128xf32>
    tpu.vector_store %arg3[%c0_8, %c0_9], %48 {strides = array<i32>} : memref<8x128xf32, #tpu.memory_space<vmem>>, vector<8x128xf32>,
    return
  }
  func.func @transform_0(%arg0: i32) -> i32 {
    %c0_i32 = arith.constant 0 : i32
    %c0_i32_0 = arith.constant 0 : i32
    return %c0_i32 : i32
  }
  func.func @transform_1(%arg0: i32) -> (i32, i32, i32) {
    %c0_i32 = arith.constant 0 : i32
    %c0_i32_0 = arith.constant 0 : i32
    %c0_i32_1 = arith.constant 0 : i32
    return %c0_i32, %arg0, %c0_i32_0 : i32, i32, i32
  }
  func.func @transform_2(%arg0: i32) -> (i32, i32) {
    %c0_i32 = arith.constant 0 : i32
    %c0_i32_0 = arith.constant 0 : i32
    return %arg0, %c0_i32 : i32, i32
  }
}

</mosaic_0001>

<llo_original>
// kernel: tpu_custom_call.1
$region0: #{tpu_custom_call.1}
  #allocation0 [shape = 'u32[]', space=smem, size = 0x4, offset = 0x4, fixed_abs, tag = 'smem constant byte address 0x4 - core index']
  #allocation1 [shape = 'u32[144,128]{1,0:T(1,128)}', space=vmem, size = 0x12000, scoped, tag = 'internal scratch']
  %s0 = inlined_call_operand.hbm [shape: f32[9], index: 0, kind: input, shape index: {}]
  %s1 = inlined_call_operand.hbm [shape: f32[2,8,128], index: 1, kind: input, shape index: {}]
  %s2 = inlined_call_operand.hbm [shape: f32[8,128], index: 2, kind: output, shape index: {}]
  %s3 = sld [smem:[#allocation0]]
  $region26: #{tpu_custom_call.1} parent=0
    _
  %s5 = ssub.s32 1, %s3
  %s6 = scalar_select 0, %s5, %s3
  $region1: #{tpu_custom_call.1} parent=0
    #allocation2 [shape = 'u8[512]{0}', space=smem, size = 0x200, scoped, tag = 'input window, operand 0, single buffered']
    #allocation3 [shape = 's32[1]{0}', space=sflag, size = 0x4, scoped, tag = 'scoped memory for tpu_custom_call.1']
    #allocation4 [shape = 's32[1]{0}', space=sflag, size = 0x4, scoped, tag = 'scoped memory for tpu_custom_call.1']
    #allocation5 [shape = 's32[1]{0}', space=sflag, size = 0x4, scoped, tag = 'scoped memory for tpu_custom_call.1']
    #allocation6 [shape = 'u8[8192]{0}', space=vmem, size = 0x2000, scoped, tag = 'input window, operand 1, single buffered']
    #allocation7 [shape = 'u8[4096]{0}', space=vmem, size = 0x1000, scoped, tag = 'output window, operand 0, single buffered']
    %7 = vsyncpa [#allocation5], 0
    %8 = vsyncpa [#allocation3], 0
    %9 = vsyncpa [#allocation4], 0
    // Predicated region
    $region2: #{tpu_custom_call.1} parent=1 // pred_check
      _
    $region3: #{tpu_custom_call.1} parent=1 // pred_check_branch
      %11 = sbr.rel (0) target = $region5
    $region4: #{tpu_custom_call.1} parent=1 // pred_region
      %s13 = ssub.s32 16, 16
      %14 = vsyncadd [#allocation5], %s13
      %17 = dma.hbm_to_smem %s0, 16, [#allocation2], [#allocation5]
    $region5: #{tpu_custom_call.1} parent=1 // pred_fallthru
      _
    // Predicated region
    $region6: #{tpu_custom_call.1} parent=1 // pred_check
      _
    $region7: #{tpu_custom_call.1} parent=1 // pred_check_branch
      %19 = sbr.rel (0) target = $region9
    $region8: #{tpu_custom_call.1} parent=1 // pred_region
      %s21 = ssub.s32 256, 256
      %22 = vsyncadd [#allocation3], %s21
      %s23 = sshll.u32 [#allocation6], 4
      %s24 = int_to_ptr.vmem [resolvable:$true] %s23
      %29 = dma.hbm_to_vmem [thread:$0]  %s1, 256, %s24, [#allocation3], 128, 128, 8
    $region9: #{tpu_custom_call.1} parent=1 // pred_fallthru
      _
    // Predicated region
    $region10: #{tpu_custom_call.1} parent=1 // pred_check
      _
    $region11: #{tpu_custom_call.1} parent=1 // pred_check_branch
      %31 = sbr.rel (0) target = $region13
    $region12: #{tpu_custom_call.1} parent=1 // pred_region
      %32 = dma.done [#allocation5], 16
    $region13: #{tpu_custom_call.1} parent=1 // pred_fallthru
      _
    // Predicated region
    $region14: #{tpu_custom_call.1} parent=1 // pred_check
      _
    $region15: #{tpu_custom_call.1} parent=1 // pred_check_branch
      %34 = sbr.rel (0) target = $region17
    $region16: #{tpu_custom_call.1} parent=1 // pred_region
      %35 = dma.done [#allocation3], 256
    $region17: #{tpu_custom_call.1} parent=1 // pred_fallthru
      _
    %36 = sfence
    %v37 = vld [vmem:[#allocation6] sm:$0xff]
    %s38 = scalar_lea.vmem [#allocation6], 8
    %v39 = vld [vmem:[%s38] sm:$0xff]
    %s40 = sld [smem:[#allocation2]]
    %s41 = sld [smem:[#allocation2 + $0x1]]
    %s42 = sld [smem:[#allocation2 + $0x2]]
    %s43 = sld [smem:[#allocation2 + $0x3]]
    %s44 = sld [smem:[#allocation2 + $0x4]]
    %s45 = sld [smem:[#allocation2 + $0x5]]
    %s46 = sld [smem:[#allocation2 + $0x6]]
    %s47 = sld [smem:[#allocation2 + $0x7]]
    %s48 = sld [smem:[#allocation2 + $0x8]]
    %v49 = vstv %s40
    %v50 = vmul.f32 %v37, %v49
    %v51 = vstv %s41
    %v52 = vmul.f32 %v39, %v51
    %v53 = vadd.f32 %v50, %v52
    %v54 = vstv %s44
    %v55 = vadd.f32 %v53, %v54
    %v56 = vxor.u32 %v55, 2147483648
    %v57 = vmul.f32 %v56, 1.442695
    %v58 = vpow.pop %v57
    %v59 = vadd.f32 %v58, 1.0
    %v60 = vrcp.pop %v59
    %v61 = vmul.f32 1.0, %v60
    %v62 = vstv %s42
    %v63 = vmul.f32 %v37, %v62
    %v64 = vstv %s43
    %v65 = vmul.f32 %v39, %v64
    %v66 = vadd.f32 %v63, %v65
    %v67 = vstv %s45
    %v68 = vadd.f32 %v66, %v67
    %v69 = vxor.u32 %v68, 2147483648
    %v70 = vmul.f32 %v69, 1.442695
    %v71 = vpow.pop %v70
    %v72 = vadd.f32 %v71, 1.0
    %v73 = vrcp.pop %v72
    %v74 = vmul.f32 1.0, %v73
    %v75 = vstv %s46
    %v76 = vmul.f32 %v61, %v75
    %v77 = vstv %s47
    %v78 = vmul.f32 %v74, %v77
    %v79 = vadd.f32 %v76, %v78
    %v80 = vstv %s48
    %v81 = vadd.f32 %v79, %v80
    %v82 = vxor.u32 %v81, 2147483648
    %v83 = vmul.f32 %v82, 1.442695
    %v84 = vpow.pop %v83
    %v85 = vadd.f32 %v84, 1.0
    %v86 = vrcp.pop %v85
    %v87 = vmul.f32 1.0, %v86
    %88 = vst [vmem:[#allocation7] sm:$0xff] %v87
    // Predicated region
    $region18: #{tpu_custom_call.1} parent=1 // pred_check
      _
    $region19: #{tpu_custom_call.1} parent=1 // pred_check_branch
      %90 = sbr.rel (0) target = $region21
    $region20: #{tpu_custom_call.1} parent=1 // pred_region
      %s92 = ssub.s32 128, 128
      %93 = vsyncadd [#allocation4], %s92
      %s95 = sshll.u32 [#allocation7], 4
      %s96 = int_to_ptr.vmem [resolvable:$true] %s95
      %98 = dma.vmem_to_hbm [thread:$0]  %s96, 128, %s2, [#allocation4]
    $region21: #{tpu_custom_call.1} parent=1 // pred_fallthru
      _
    // Predicated region
    $region22: #{tpu_custom_call.1} parent=1 // pred_check
      _
    $region23: #{tpu_custom_call.1} parent=1 // pred_check_branch
      %100 = sbr.rel (0) target = $region25
    $region24: #{tpu_custom_call.1} parent=1 // pred_region
      %101 = dma.done [#allocation4], 128
    $region25: #{tpu_custom_call.1} parent=1 // pred_fallthru
      _
    %102 = vsyncpa [#allocation3], 1
    %103 = vsyncpa [#allocation4], 1
    %104 = vsyncpa [#allocation5], 1

</llo_original>
